<compile_context>
chip_gen: v7x
topology: tpu7x:2x2x1
jax: 0.10.0
libtpu: 0.0.40
codegen_flags: <defaults>
</compile_context>

<pallas_src>
import jax
import jax.numpy as jnp
from jax.experimental import pallas as pl
from jax.experimental.pallas import tpu as pltpu


def _mlp_kernel(x_ref, wgu_ref, wd_ref, o_ref):
    # x_ref:   (tm, H)   bf16 token tile
    # wgu_ref: (H, 2I)   fused [gate | up] weight, bf16, (in, out) layout
    # wd_ref:  (I, H)    down_proj weight, bf16, (in, out) layout
    # o_ref:   (tm, H)   output tile (original input dtype)
    inter = wd_ref.shape[0]
    x = x_ref[...]
    # One fused MXU pass for gate and up; accumulate in f32.
    gu = jnp.dot(x, wgu_ref[...], preferred_element_type=jnp.float32)
    gate = gu[:, :inter]
    up = gu[:, inter:]
    # SiLU(gate) * up in f32 (EUP sigmoid + VPU muls).
    act = gate * jax.nn.sigmoid(gate) * up
    out = jnp.dot(act.astype(wd_ref.dtype), wd_ref[...],
                  preferred_element_type=jnp.float32)
    o_ref[...] = out.astype(o_ref.dtype)


def nano_llama_mlp(x, wg_t, wu_t, wd_t, *, tm=None):
    """x: (bsz, seq, hidden); w*_t: weights already transposed to (in, out)."""
    bsz, seq, hidden = x.shape
    inter = wg_t.shape[1]
    assert wg_t.shape == (hidden, inter)
    assert wu_t.shape == (hidden, inter)
    assert wd_t.shape == (inter, hidden)

    tokens = bsz * seq
    x2d = x.reshape(tokens, hidden).astype(jnp.bfloat16)

    # Fuse gate/up weights into one (H, 2I) matmul operand (2I = 128 lanes).
    wgu = jnp.concatenate([wg_t, wu_t], axis=1).astype(jnp.bfloat16)
    wd = wd_t.astype(jnp.bfloat16)

    if tm is None:
        tm = tokens
        if tokens > 512:  # cap tile; keep multiple grid steps for big inputs
            for cand in (512, 256, 128, 64, 32, 16):
                if tokens % cand == 0:
                    tm = cand
                    break
    assert tm == tokens or (tm % 16 == 0 and tokens % tm == 0), (
        "tm must equal tokens, or be a multiple of 16 that divides tokens")

    grid_m = tokens // tm

    def _weight_spec(shape):
        # Weights are grid-invariant (index_map always (0, 0)); when the grid
        # actually iterates, single-buffer them so they don't cost 2x VMEM.
        if grid_m > 1:
            return pl.BlockSpec(shape, lambda i: (0, 0),
                                pipeline_mode=pl.Buffered(1))
        return pl.BlockSpec(shape, lambda i: (0, 0))

    flops = 2 * tokens * hidden * (2 * inter) + 2 * tokens * inter * hidden
    bytes_accessed = (x2d.size * 2 + wgu.size * 2 + wd.size * 2
                      + tokens * hidden * x.dtype.itemsize)
    cost = pl.CostEstimate(flops=flops,
                           transcendentals=tokens * inter,
                           bytes_accessed=bytes_accessed)

    out2d = pl.pallas_call(
        _mlp_kernel,
        out_shape=jax.ShapeDtypeStruct((tokens, hidden), x.dtype),
        grid_spec=pl.GridSpec(
            grid=(grid_m,),
            in_specs=[
                pl.BlockSpec((tm, hidden), lambda i: (i, 0)),
                _weight_spec((hidden, 2 * inter)),
                _weight_spec((inter, hidden)),
            ],
            out_specs=pl.BlockSpec((tm, hidden), lambda i: (i, 0)),
        ),
        compiler_params=pltpu.CompilerParams(
            dimension_semantics=("parallel",)),
        cost_estimate=cost,
    )(x2d, wgu, wd)
    return out2d.reshape(bsz, seq, hidden)


def _reference(x, wg_t, wu_t, wd_t):
    g = x @ wg_t
    u = x @ wu_t
    return (jax.nn.silu(g) * u) @ wd_t


if __name__ == "__main__":
    # cfg: hidden_size=32, intermediate_size=64, mlp_bias=False
    bsz, seq, hidden, inter = 2, 8, 32, 64

    key = jax.random.PRNGKey(0)
    kx, kg, ku, kd = jax.random.split(key, 4)

    x = jax.random.normal(kx, (bsz, seq, hidden), dtype=jnp.float32)
    # torch Linear weights are (out, in); initialize directly in the
    # transposed (in, out) layout the kernel consumes.
    wg_t = jax.random.normal(kg, (hidden, inter), dtype=jnp.float32) * 0.05
    wu_t = jax.random.normal(ku, (hidden, inter), dtype=jnp.float32) * 0.05
    wd_t = jax.random.normal(kd, (inter, hidden), dtype=jnp.float32) * 0.05

    out = nano_llama_mlp(x, wg_t, wu_t, wd_t)
    jax.block_until_ready(out)

    ref = _reference(x, wg_t, wu_t, wd_t)
    assert out.shape == (bsz, seq, hidden)
    # bf16 MXU inputs vs. full-f32 reference -> loose-but-safe tolerance.
    assert jnp.allclose(out, ref, atol=1e-2, rtol=1e-2), "mismatch vs reference"

    print("KERNEL_OK")
</pallas_src>

<mosaic_0001>
module attributes {stable_mosaic.version = 11 : i64} {
  func.func @_mlp_kernel(%arg0: i32, %arg1: memref<16x32xbf16, #tpu.memory_space<vmem>>, %arg2: memref<32x128xbf16, #tpu.memory_space<vmem>>, %arg3: memref<64x32xbf16, #tpu.memory_space<vmem>>, %arg4: memref<16x32xf32, #tpu.memory_space<vmem>>) attributes {dimension_semantics = [#tpu.dimension_semantics<parallel>], iteration_bounds = array<i64: 1>, scalar_prefetch = 0 : i64, scratch_operands = 0 : i64, tpu.core_type = #tpu.core_type<tc>, window_params = [{transform_indices = @transform_0, window_bounds = array<i64: 16, 32>}, {pipeline_mode = #tpu.pipeline_mode<synchronous>, transform_indices = @transform_1, window_bounds = array<i64: 32, 128>}, {pipeline_mode = #tpu.pipeline_mode<synchronous>, transform_indices = @transform_2, window_bounds = array<i64: 64, 32>}, {transform_indices = @transform_3, window_bounds = array<i64: 16, 32>}]} {
    %c0 = arith.constant 0 : index
    %c0_0 = arith.constant 0 : index
    %0 = vector.load %arg1[%c0, %c0_0] : memref<16x32xbf16, #tpu.memory_space<vmem>>, vector<16x32xbf16>
    %c0_1 = arith.constant 0 : index
    %c0_2 = arith.constant 0 : index
    %1 = vector.load %arg2[%c0_1, %c0_2] : memref<32x128xbf16, #tpu.memory_space<vmem>>, vector<32x128xbf16>
    %cst = arith.constant dense<0.000000e+00> : vector<16x128xf32>
    %2 = tpu.matmul %0, %1, %cst {dimension_numbers = #tpu.dot_dimension_numbers<[1], [0], [0], [1], [0, 0, 1, 1], [], []>} : vector<16x32xbf16>, vector<32x128xbf16>, vector<16x128xf32> -> vector<16x128xf32>
    %3 = vector.extract_strided_slice %2 {offsets = [0, 0], sizes = [16, 64], strides = [1, 1]} : vector<16x128xf32> to vector<16x64xf32>
    %4 = vector.extract_strided_slice %2 {offsets = [0, 64], sizes = [16, 64], strides = [1, 1]} : vector<16x128xf32> to vector<16x64xf32>
    %5 = arith.negf %3 : vector<16x64xf32>
    %6 = math.exp %5 : vector<16x64xf32>
    %cst_3 = arith.constant 1.000000e+00 : f32
    %7 = vector.broadcast %cst_3 : f32 to vector<16x64xf32>
    %8 = arith.addf %7, %6 : vector<16x64xf32>
    %9 = arith.divf %7, %8 : vector<16x64xf32>
    %10 = arith.mulf %3, %9 : vector<16x64xf32>
    %11 = arith.mulf %10, %4 : vector<16x64xf32>
    %12 = arith.truncf %11 : vector<16x64xf32> to vector<16x64xbf16>
    %c0_4 = arith.constant 0 : index
    %c0_5 = arith.constant 0 : index
    %13 = vector.load %arg3[%c0_4, %c0_5] : memref<64x32xbf16, #tpu.memory_space<vmem>>, vector<64x32xbf16>
    %cst_6 = arith.constant dense<0.000000e+00> : vector<16x32xf32>
    %14 = tpu.matmul %12, %13, %cst_6 {dimension_numbers = #tpu.dot_dimension_numbers<[1], [0], [0], [1], [0, 0, 1, 1], [], []>} : vector<16x64xbf16>, vector<64x32xbf16>, vector<16x32xf32> -> vector<16x32xf32>
    %c0_7 = arith.constant 0 : index
    %c0_8 = arith.constant 0 : index
    %15 = vector.load %arg4[%c0_7, %c0_8] : memref<16x32xf32, #tpu.memory_space<vmem>>, vector<16x32xf32>
    tpu.vector_store %arg4[%c0_7, %c0_8], %14 {strides = array<i32>} : memref<16x32xf32, #tpu.memory_space<vmem>>, vector<16x32xf32>,
    return
  }
  func.func @transform_0(%arg0: i32) -> (i32, i32) {
    %c0_i32 = arith.constant 0 : i32
    %c0_i32_0 = arith.constant 0 : i32
    return %arg0, %c0_i32 : i32, i32
  }
  func.func @transform_1(%arg0: i32) -> (i32, i32) {
    %c0_i32 = arith.constant 0 : i32
    %c0_i32_0 = arith.constant 0 : i32
    %c0_i32_1 = arith.constant 0 : i32
    return %c0_i32, %c0_i32_0 : i32, i32
  }
  func.func @transform_2(%arg0: i32) -> (i32, i32) {
    %c0_i32 = arith.constant 0 : i32
    %c0_i32_0 = arith.constant 0 : i32
    %c0_i32_1 = arith.constant 0 : i32
    return %c0_i32, %c0_i32_0 : i32, i32
  }
  func.func @transform_3(%arg0: i32) -> (i32, i32) {
    %c0_i32 = arith.constant 0 : i32
    %c0_i32_0 = arith.constant 0 : i32
    return %arg0, %c0_i32 : i32, i32
  }
}

</mosaic_0001>

<llo_original>
// kernel: tpu_custom_call.1
$region0: #{tpu_custom_call.1}
  #allocation0 [shape = 'u32[]', space=smem, size = 0x4, offset = 0x4, fixed_abs, tag = 'smem constant byte address 0x4 - core index']
  #allocation1 [shape = 'u32[144,128]{1,0:T(1,128)}', space=vmem, size = 0x12000, scoped, tag = 'internal scratch']
  %s0 = inlined_call_operand.vmem [shape: bf16[16,32], index: 0, kind: input, shape index: {}]
  %s1 = inlined_call_operand.vmem [shape: bf16[32,128], index: 1, kind: input, shape index: {}]
  %s2 = inlined_call_operand.vmem [shape: bf16[64,32], index: 2, kind: input, shape index: {}]
  %s3 = inlined_call_operand.hbm [shape: f32[16,32], index: 3, kind: output, shape index: {}]
  %s4 = sld [smem:[#allocation0]]
  $region22: #{tpu_custom_call.1} parent=0
    _
  %s6 = ssub.s32 1, %s4
  %s7 = scalar_select 0, %s6, %s4
  $region1: #{tpu_custom_call.1} parent=0
    #allocation2 [shape = 'u8[8192]{0}', space=vmem, size = 0x2000, scoped, tag = 'output window, operand 0, single buffered']
    #allocation3 [shape = 's32[1]{0}', space=sflag, size = 0x4, scoped, tag = 'scoped memory for tpu_custom_call.1']
    %8 = vsyncpa [#allocation3], 0
    // Predicated region
    $region2: #{tpu_custom_call.1} parent=1 // pred_check
      _
    $region3: #{tpu_custom_call.1} parent=1 // pred_check_branch
      %10 = sbr.rel (0) target = $region5
    $region4: #{tpu_custom_call.1} parent=1 // pred_region
      _
    $region5: #{tpu_custom_call.1} parent=1 // pred_fallthru
      _
    // Predicated region
    $region6: #{tpu_custom_call.1} parent=1 // pred_check
      _
    $region7: #{tpu_custom_call.1} parent=1 // pred_check_branch
      %12 = sbr.rel (0) target = $region9
    $region8: #{tpu_custom_call.1} parent=1 // pred_region
      _
    $region9: #{tpu_custom_call.1} parent=1 // pred_fallthru
      _
    // Predicated region
    $region10: #{tpu_custom_call.1} parent=1 // pred_check
      _
    $region11: #{tpu_custom_call.1} parent=1 // pred_check_branch
      %14 = sbr.rel (0) target = $region13
    $region12: #{tpu_custom_call.1} parent=1 // pred_region
      _
    $region13: #{tpu_custom_call.1} parent=1 // pred_fallthru
      _
    %v16 = vld [vmem:[%s0] sm:$0xf]
    %v17 = vld [vmem:[%s0 + $0x4] sm:$0xf]
    %v18 = vld [vmem:[%s1] sm:$0xf]
    %v19 = vld [vmem:[%s1 + $0x4] sm:$0xf]
    %v20 = vld [vmem:[%s1 + $0x8] sm:$0xf]
    %v21 = vld [vmem:[%s1 + $0xc] sm:$0xf]
    %v24 = vunpack.c.l.b16 %v16
    %v25 = vunpack.c.l.b16 %v17
    %v26 = vpack.c.b16 %v25, %v24
    %v31 = vunpack.c.l.b16 %v18
    %v32 = vunpack.c.l.b16 %v19
    %v33 = vunpack.c.l.b16 %v20
    %v34 = vunpack.c.l.b16 %v21
    %v35 = vpack.c.b16 %v32, %v31
    %v36 = vpack.c.b16 %v34, %v33
    %vm39 = vcmask 261120
    %v41 = vsel %vm39, %v26, 0
    %43 = vmatprep.subr.bf16.mxu0 0
    %44 = vmatpush1.bf16.msra.mxu0 %v35
    %45 = vmatprep.subr.bf16.mxu0 0
    %46 = vmatpush1.bf16.msra.mxu0 %v36
    %47 = vmatprep.subr.bf16.mxu0 0
    %48 = vmatpush1.bf16.msra.mxu0 0
    %49 = vmatprep.subr.bf16.mxu0 0
    %50 = vmatpush1.bf16.msra.mxu0 0
    %51 = vmatprep.subr.bf16.mxu0 0
    %52 = vmatpush1.bf16.msra.mxu0 0
    %53 = vmatprep.subr.bf16.mxu0 0
    %54 = vmatpush1.bf16.msra.mxu0 0
    %55 = vmatprep.subr.bf16.mxu0 0
    %56 = vmatpush1.bf16.msra.mxu0 0
    %57 = vmatprep.subr.bf16.mxu0 0
    %58 = vmatpush1.bf16.msra.mxu0 0
    %59 = vmatprep.subr.bf16.mxu0 0
    %60 = vmatpush1.bf16.msra.mxu0 0
    %61 = vmatprep.subr.bf16.mxu0 0
    %62 = vmatpush1.bf16.msra.mxu0 0
    %63 = vmatprep.subr.bf16.mxu0 0
    %64 = vmatpush1.bf16.msra.mxu0 0
    %65 = vmatprep.subr.bf16.mxu0 0
    %66 = vmatpush1.bf16.msra.mxu0 0
    %67 = vmatprep.subr.bf16.mxu0 0
    %68 = vmatpush1.bf16.msra.mxu0 0
    %69 = vmatprep.subr.bf16.mxu0 0
    %70 = vmatpush1.bf16.msra.mxu0 0
    %71 = vmatprep.subr.bf16.mxu0 0
    %72 = vmatpush1.bf16.msra.mxu0 0
    %73 = vmatprep.subr.bf16.mxu0 0
    %74 = vmatpush1.bf16.msra.mxu0 0
    %75 = vmatprep.mubr.bf16.mxu0 0
    %76 = vmatmul.mubr.bf16.gmra.mrb[0].mxu0 %v41
    %v77 = vpop.f32.mrb[0].mxu0
    %v78 = vadd.f32 0.0, %v77
    %v79 = vpop.f32.mrb[0].mxu0
    %v80 = vpop.f32.mrb[0].mxu0
    %v81 = vadd.f32 0.0, %v80
    %v82 = vpop.f32.mrb[0].mxu0
    %83 = vdwg.mxu0
    %v84 = vxor.u32 %v78, 2147483648
    %v85 = vxor.u32 %v81, 2147483648
    %v86 = vmul.f32 %v84, 1.442695
    %v87 = vpow.pop %v86
    %v88 = vmul.f32 %v85, 1.442695
    %v89 = vpow.pop %v88
    %v90 = vadd.f32 %v87, 1.0
    %v91 = vadd.f32 %v89, 1.0
    %v92 = vrcp.pop %v90
    %v93 = vmul.f32 1.0, %v92
    %v94 = vrcp.pop %v91
    %v95 = vmul.f32 1.0, %v94
    %v96 = vmul.f32 %v78, %v93
    %v97 = vmul.f32 %v81, %v95
    %100 = vrot.lane.b32.xlu0 %v78, 64
    %v101 = vpop.permute.xlu0 %100
    %102 = vrot.lane.b32.xlu0 %v81, 64
    %v103 = vpop.permute.xlu0 %102
    %v106 = vmul.f32 %v96, %v101
    %v107 = vmul.f32 %v97, %v103
    %v108 = vpack.c.bf16 %v107, %v106
    %v109 = vld [vmem:[%s2] sm:$0xf]
    %v110 = vld [vmem:[%s2 + $0x4] sm:$0xf]
    %v111 = vld [vmem:[%s2 + $0x8] sm:$0xf]
    %v112 = vld [vmem:[%s2 + $0xc] sm:$0xf]
    %v113 = vld [vmem:[%s2 + $0x10] sm:$0xf]
    %v114 = vld [vmem:[%s2 + $0x14] sm:$0xf]
    %v115 = vld [vmem:[%s2 + $0x18] sm:$0xf]
    %v116 = vld [vmem:[%s2 + $0x1c] sm:$0xf]
    %v125 = vunpack.c.l.b16 %v109
    %v126 = vunpack.c.l.b16 %v110
    %v127 = vunpack.c.l.b16 %v111
    %v128 = vunpack.c.l.b16 %v112
    %v129 = vunpack.c.l.b16 %v113
    %v130 = vunpack.c.l.b16 %v114
    %v131 = vunpack.c.l.b16 %v115
    %v132 = vunpack.c.l.b16 %v116
    %v133 = vpack.c.b16 %v126, %v125
    %v134 = vpack.c.b16 %v128, %v127
    %v135 = vpack.c.b16 %v130, %v129
    %v136 = vpack.c.b16 %v132, %v131
    %vm141 = vcmask 523264
    %v143 = vsel %vm141, %v108, 0
    %145 = vmatprep.subr.bf16.mxu0 0
    %146 = vmatpush1.bf16.msra.mxu0 %v133
    %147 = vmatprep.subr.bf16.mxu0 0
    %148 = vmatpush1.bf16.msra.mxu0 %v134
    %149 = vmatprep.subr.bf16.mxu0 0
    %150 = vmatpush1.bf16.msra.mxu0 %v135
    %151 = vmatprep.subr.bf16.mxu0 0
    %152 = vmatpush1.bf16.msra.mxu0 %v136
    %153 = vmatprep.subr.bf16.mxu0 0
    %154 = vmatpush1.bf16.msra.mxu0 0
    %155 = vmatprep.subr.bf16.mxu0 0
    %156 = vmatpush1.bf16.msra.mxu0 0
    %157 = vmatprep.subr.bf16.mxu0 0
    %158 = vmatpush1.bf16.msra.mxu0 0
    %159 = vmatprep.subr.bf16.mxu0 0
    %160 = vmatpush1.bf16.msra.mxu0 0
    %161 = vmatprep.subr.bf16.mxu0 0
    %162 = vmatpush1.bf16.msra.mxu0 0
    %163 = vmatprep.subr.bf16.mxu0 0
    %164 = vmatpush1.bf16.msra.mxu0 0
    %165 = vmatprep.subr.bf16.mxu0 0
    %166 = vmatpush1.bf16.msra.mxu0 0
    %167 = vmatprep.subr.bf16.mxu0 0
    %168 = vmatpush1.bf16.msra.mxu0 0
    %169 = vmatprep.subr.bf16.mxu0 0
    %170 = vmatpush1.bf16.msra.mxu0 0
    %171 = vmatprep.subr.bf16.mxu0 0
    %172 = vmatpush1.bf16.msra.mxu0 0
    %173 = vmatprep.subr.bf16.mxu0 0
    %174 = vmatpush1.bf16.msra.mxu0 0
    %175 = vmatprep.subr.bf16.mxu0 0
    %176 = vmatpush1.bf16.msra.mxu0 0
    %177 = vmatprep.mubr.bf16.mxu0 0
    %178 = vmatmul.mubr.bf16.gmra.mrb[0].mxu0 %v143
    %v179 = vpop.f32.mrb[0].mxu0
    %v180 = vadd.f32 0.0, %v179
    %v181 = vpop.f32.mrb[0].mxu0
    %v182 = vpop.f32.mrb[0].mxu0
    %v183 = vadd.f32 0.0, %v182
    %v184 = vpop.f32.mrb[0].mxu0
    %185 = vdwg.mxu0
    %186 = vst.msk [vmem:[#allocation2] sm:$0xff] %vm39, %v180
    %187 = vst.msk [vmem:[#allocation2 + $0x8] sm:$0xff] %vm39, %v183
    // Predicated region
    $region14: #{tpu_custom_call.1} parent=1 // pred_check
      _
    $region15: #{tpu_custom_call.1} parent=1 // pred_check_branch
      %189 = sbr.rel (0) target = $region17
    $region16: #{tpu_custom_call.1} parent=1 // pred_region
      %s191 = ssub.s32 256, 256
      %192 = vsyncadd [#allocation3], %s191
      %s193 = sshll.u32 [#allocation2], 4
      %s194 = int_to_ptr.vmem [resolvable:$true] %s193
      %199 = dma.vmem_to_hbm [thread:$0]  %s194, 256, %s3, [#allocation3], 128, 128, 8
    $region17: #{tpu_custom_call.1} parent=1 // pred_fallthru
      _
    // Predicated region
    $region18: #{tpu_custom_call.1} parent=1 // pred_check
      _
    $region19: #{tpu_custom_call.1} parent=1 // pred_check_branch
      %201 = sbr.rel (0) target = $region21
    $region20: #{tpu_custom_call.1} parent=1 // pred_region
      %202 = dma.done [#allocation3], 256
    $region21: #{tpu_custom_call.1} parent=1 // pred_fallthru
      _
    %203 = vsyncpa [#allocation3], 1

</llo_original>
